<compile_context>
chip_gen: v6e
topology: v6e:2x2x1
jax: 0.10.0
libtpu: 0.0.40
codegen_flags: <defaults>
</compile_context>

<pallas_src>
import math

import jax
import jax.numpy as jnp
from jax import lax
from jax.experimental import pallas as pl
from jax.experimental.pallas import tpu as pltpu

HEADS = 2
HEADS_DIM = 3
EMB = 4
UNIFY_OUT = 3      # w_unify_heads is [6, 3] -> the module's output width is 3
OUT_PAD = 8        # padded output lanes (block last dim == full array dim -> legal)
NEG_INF = -1e30

# Deterministic weights, identical to the PyTorch module's tensors.
W_KEY = jnp.array([[1, 0, 1, 1, 0, 1],
                   [1, 0, 0, 1, 0, 0],
                   [0, 1, 0, 0, 1, 0],
                   [1, 0, 1, 1, 0, 1]], dtype=jnp.float32)

W_QUERY = jnp.array([[0, 0, 1, 0, 0, 1],
                     [1, 1, 0, 1, 1, 0],
                     [0, 1, 0, 0, 1, 0],
                     [1, 1, 0, 1, 1, 0]], dtype=jnp.float32)

W_VALUE = jnp.array([[1, 0, 1, 1, 0, 1],
                     [1, 1, 0, 1, 1, 0],
                     [0, 1, 1, 0, 1, 1],
                     [0, 0, 1, 0, 0, 1]], dtype=jnp.float32)

W_UNIFY = jnp.array([[1, 0, 1],
                     [0, 1, 0],
                     [0, 1, 1],
                     [1, 0, 1],
                     [0, 1, 1],
                     [1, 1, 0]], dtype=jnp.float32)


def _fold_weights():
    """Fold per-head Q/K into a 4x4 bilinear form and V+unify into a padded 4x8."""
    m_list, vu_list = [], []
    for h in range(HEADS):
        lo, hi = h * HEADS_DIM, (h + 1) * HEADS_DIM
        m_list.append(W_QUERY[:, lo:hi] @ W_KEY[:, lo:hi].T)               # (4, 4)
        vu = W_VALUE[:, lo:hi] @ W_UNIFY[lo:hi, :]                         # (4, 3)
        vu_list.append(jnp.pad(vu, ((0, 0), (0, OUT_PAD - UNIFY_OUT))))    # (4, 8)
    return jnp.stack(m_list), jnp.stack(vu_list)


M_QK, W_VU = _fold_weights()   # (2, 4, 4), (2, 4, 8)


def _round_up(x, m):
    return -(-x // m) * m


def _cdiv(a, b):
    return -(-a // b)


def _vmem_capacity_bytes():
    try:
        info = pltpu.get_tpu_info()
        cap = getattr(info, "vmem_capacity_bytes", None)
        if cap:
            return int(cap)
    except Exception:
        pass
    return 128 * 1024 * 1024


def _vmem_estimate(tb, tq, ck, seq_p):
    """Rough VMEM bytes: accounts for 128-lane physical padding of the narrow
    (4 / 8 wide) last dims and for double-buffered pipeline blocks."""
    lane = 128
    x_block = tb * seq_p * lane * 4 * 2                    # f32 x block, double-buffered
    out_block = tb * tq * lane * 4 * 2                     # f32 out block, double-buffered
    vproj = HEADS * tb * _round_up(seq_p, 8) * lane * 4    # f32 vproj scratch
    work = 8 * tb * tq * ck * 4                            # per-chunk s/e/pv temporaries + slack
    return x_block + out_block + vproj + work


def self_attention(x, *, tq=None, ck=None, tb=None, pv_bf16=True):
    """x: (bs, seq, 4) float32 -> (bs, seq, 3) float32 (matches the module's forward)."""
    bs, seq, emb = x.shape
    assert emb == EMB
    x = x.astype(jnp.float32)

    # ---- generation-aware sizing -------------------------------------------
    vmem_cap = _vmem_capacity_bytes()
    small_vmem = vmem_cap <= 64 * 1024 * 1024              # v7x: 64 MiB per TensorCore
    vmem_limit = min(int(vmem_cap * 0.75),
                     (40 if small_vmem else 96) * 1024 * 1024)

    seq8 = _round_up(seq, 8)
    if tq is None:
        tq = 256 if small_vmem else 512                    # larger tiles on v5e/v6e (128 MiB VMEM)
    tq = max(8, _round_up(min(tq, seq8), 8))
    if ck is None:
        ck = 256 if small_vmem else 512
    if ck >= seq8:
        ck = seq8                                          # single KV chunk
    else:
        ck = max(8, _round_up(ck, 8))

    if tb is None:
        tb = min(4 if small_vmem else 8, bs)
        if bs >= 2 and _cdiv(bs, tb) < 2:                  # keep >=2 steps on the "parallel"
            tb = _cdiv(bs, 2)                              # axis so both v7x cores get work
    tb = max(1, min(tb, bs))

    def _padded_seq(tq_, ck_):
        return _round_up(seq8, math.lcm(tq_, ck_))

    seq_p = _padded_seq(tq, ck)
    # Shrink tiles until the (lane-padding aware) VMEM estimate fits the budget.
    while (_vmem_estimate(tb, tq, ck, seq_p) > vmem_limit
           and (tb > 1 or ck > 16 or tq > 8)):
        if tb > 1:
            tb = _cdiv(tb, 2)
        elif ck > 16:
            ck = max(16, _round_up(ck // 2, 8))
        else:
            tq = max(8, _round_up(tq // 2, 8))
        seq_p = _padded_seq(tq, ck)

    bs_p = _cdiv(bs, tb) * tb
    x_p = x
    if bs_p != bs or seq_p != seq:
        x_p = jnp.pad(x, ((0, bs_p - bs), (0, seq_p - seq), (0, 0)))

    n_full = seq // ck                   # KV chunks with no padded keys (no masking)
    rem = seq - n_full * ck              # valid keys in the one partially-padded chunk
    n_kv = n_full + (1 if rem else 0)    # pad-only chunks beyond this are never touched
    pv_dtype = jnp.bfloat16 if pv_bf16 else jnp.float32

    def kernel(x_ref, mqk_ref, wvu_ref, o_ref, vproj_ref):
        q_idx = pl.program_id(1)

        # (a) Value + unify projection, hoisted: computed once per batch tile
        #     (at q tile 0) into persistent VMEM scratch, reused by all q tiles.
        @pl.when(q_idx == 0)
        def _compute_vproj():
            def vproj_chunk(c, carry):
                off = pl.multiple_of(c * ck, ck)
                xc = x_ref[:, pl.ds(off, ck), :]                        # (tb, ck, 4)
                for h in range(HEADS):
                    vp = jnp.einsum("bke,ef->bkf", xc, wvu_ref[h],
                                    preferred_element_type=jnp.float32)
                    vproj_ref[h, :, pl.ds(off, ck), :] = vp
                return carry
            lax.fori_loop(0, n_kv, vproj_chunk, 0)

        # (b) Query tile, sliced from the resident full-sequence x block
        #     (no duplicate q-side input / DMA stream).
        q_start = pl.multiple_of(q_idx * tq, tq)
        xq = x_ref[:, pl.ds(q_start, tq), :]                            # (tb, tq, 4)
        qm = [jnp.einsum("bqe,ef->bqf", xq, mqk_ref[h],
                         preferred_element_type=jnp.float32)
              for h in range(HEADS)]                                    # q . (Wq_h Wk_h^T)

        # (c) Online (flash-style) softmax over KV chunks; both heads share each
        #     x chunk load.  `valid` is None for fully-valid chunks (no mask).
        def attend(off, carry, valid):
            xk = x_ref[:, pl.ds(off, ck), :]                            # (tb, ck, 4)
            nxt = []
            for h in range(HEADS):
                m_p, l_p, a_p = carry[h]
                s = jnp.einsum("bqe,bke->bqk", qm[h], xk,
                               preferred_element_type=jnp.float32)      # (tb, tq, ck)
                if valid is not None:
                    mask = lax.broadcasted_iota(jnp.int32, (1, 1, ck), 2) < valid
                    s = jnp.where(mask, s, NEG_INF)
                m_n = jnp.maximum(m_p, jnp.max(s, axis=-1, keepdims=True))
                alpha = jnp.exp(m_p - m_n)
                e = jnp.exp(s - m_n)
                l_n = alpha * l_p + jnp.sum(e, axis=-1, keepdims=True)
                vp = vproj_ref[h, :, pl.ds(off, ck), :]                 # (tb, ck, 8)
                pv = jnp.einsum("bqk,bkf->bqf",
                                e.astype(pv_dtype), vp.astype(pv_dtype),
                                preferred_element_type=jnp.float32)
                nxt.append((m_n, l_n, alpha * a_p + pv))
            return tuple(nxt)

        carry = tuple((jnp.full((tb, tq, 1), NEG_INF, jnp.float32),
                       jnp.zeros((tb, tq, 1), jnp.float32),
                       jnp.zeros((tb, tq, OUT_PAD), jnp.float32))
                      for _ in range(HEADS))
        if n_full > 0:
            carry = lax.fori_loop(
                0, n_full,
                lambda c, carry: attend(pl.multiple_of(c * ck, ck), carry, None),
                carry)
        if rem:
            carry = attend(n_full * ck, carry, rem)   # the one partially-padded chunk

        # (d) Deferred normalization (exact reciprocal on (tb, tq, 1)) + head sum.
        out = None
        for h in range(HEADS):
            _, l_h, a_h = carry[h]
            o_h = a_h * pl.reciprocal(l_h)
            out = o_h if out is None else out + o_h
        o_ref[...] = out

    out_p = pl.pallas_call(
        kernel,
        out_shape=jax.ShapeDtypeStruct((bs_p, seq_p, OUT_PAD), jnp.float32),
        grid_spec=pltpu.PrefetchScalarGridSpec(
            num_scalar_prefetch=0,
            grid=(bs_p // tb, seq_p // tq),
            in_specs=[
                pl.BlockSpec((tb, seq_p, EMB), lambda b, q: (b, 0, 0)),       # x (q + K/V side)
                pl.BlockSpec((HEADS, EMB, EMB), lambda b, q: (0, 0, 0)),      # folded Wq Wk^T
                pl.BlockSpec((HEADS, EMB, OUT_PAD), lambda b, q: (0, 0, 0)),  # folded Wv Wu (padded)
            ],
            out_specs=pl.BlockSpec((tb, tq, OUT_PAD), lambda b, q: (b, q, 0)),
            scratch_shapes=[pltpu.VMEM((HEADS, tb, seq_p, OUT_PAD), jnp.float32)],
        ),
        compiler_params=pltpu.CompilerParams(
            dimension_semantics=("parallel", "arbitrary"),
            vmem_limit_bytes=vmem_limit,
        ),
    )(x_p, M_QK, W_VU)

    return out_p[:bs, :seq, :UNIFY_OUT]


def _reference(x):
    # Pure-JAX reference mirroring the PyTorch forward exactly (unfolded weights).
    bs, seq, emb = x.shape
    q = (x @ W_QUERY).reshape(bs, seq, HEADS, HEADS_DIM).transpose(0, 2, 1, 3)
    k = (x @ W_KEY).reshape(bs, seq, HEADS, HEADS_DIM).transpose(0, 2, 1, 3)
    v = (x @ W_VALUE).reshape(bs, seq, HEADS, HEADS_DIM).transpose(0, 2, 1, 3)
    s = jnp.einsum("bhqd,bhkd->bhqk", q, k)
    p = jax.nn.softmax(s, axis=-1)
    o = jnp.einsum("bhqk,bhkd->bhqd", p, v)
    o = o.transpose(0, 2, 1, 3).reshape(bs, seq, HEADS * HEADS_DIM)
    return o @ W_UNIFY


if __name__ == "__main__":
    # TOL_BF16 covers only the bf16 cast of the PV-matmul operands (stats and the
    # reciprocal are exact f32); TOL_F32 matches the previously-validated all-f32
    # configuration.  Any structural/indexing bug would be orders of magnitude larger.
    TOL_BF16 = 4e-2
    TOL_F32 = 2e-2

    key = jax.random.PRNGKey(0)
    k1, k2, k3 = jax.random.split(key, 3)

    # Case 1: aligned small shapes (bs=2, seq=8): single KV chunk, single q tile.
    x1 = jax.random.normal(k1, (2, 8, EMB), dtype=jnp.float32)
    o1 = jax.block_until_ready(self_attention(x1))
    r1 = _reference(x1)
    assert o1.shape == (2, 8, UNIFY_OUT)
    assert jnp.allclose(o1, r1, atol=TOL_BF16, rtol=TOL_BF16), float(jnp.max(jnp.abs(o1 - r1)))

    # Case 2: unaligned shapes (bs=3, seq=13): batch/seq padding + masked partial KV chunk.
    x2 = jax.random.normal(k2, (3, 13, EMB), dtype=jnp.float32)
    o2 = jax.block_until_ready(self_attention(x2))
    r2 = _reference(x2)
    assert o2.shape == (3, 13, UNIFY_OUT)
    assert jnp.allclose(o2, r2, atol=TOL_BF16, rtol=TOL_BF16), float(jnp.max(jnp.abs(o2 - r2)))

    # Case 3: multi-chunk online softmax + several q tiles + hoisted-vproj reuse
    # (bs=2, seq=40 with tq=ck=16 -> 2 full KV chunks, 1 partial, 3 q tiles).
    x3 = jax.random.normal(k3, (2, 40, EMB), dtype=jnp.float32)
    o3 = jax.block_until_ready(self_attention(x3, tq=16, ck=16))
    r3 = _reference(x3)
    assert o3.shape == (2, 40, UNIFY_OUT)
    assert jnp.allclose(o3, r3, atol=TOL_BF16, rtol=TOL_BF16), float(jnp.max(jnp.abs(o3 - r3)))

    # Case 4: all-f32 MXU path (pv_bf16=False) at the previously-validated tolerance.
    o4 = jax.block_until_ready(self_attention(x2, pv_bf16=False))
    assert jnp.allclose(o4, r2, atol=TOL_F32, rtol=TOL_F32), float(jnp.max(jnp.abs(o4 - r2)))

    print("KERNEL_OK")
</pallas_src>

<mosaic_0001>
module attributes {stable_mosaic.version = 11 : i64} {
  func.func @kernel(%arg0: i32, %arg1: i32, %arg2: memref<1x8x4xf32, #tpu.memory_space<vmem>>, %arg3: memref<2x4x4xf32, #tpu.memory_space<vmem>>, %arg4: memref<2x4x8xf32, #tpu.memory_space<vmem>>, %arg5: memref<1x8x8xf32, #tpu.memory_space<vmem>>, %arg6: memref<2x1x8x8xf32, #tpu.memory_space<vmem>>) attributes {dimension_semantics = [#tpu.dimension_semantics<parallel>, #tpu.dimension_semantics<arbitrary>], iteration_bounds = array<i64: 2, 1>, scalar_prefetch = 0 : i64, scratch_operands = 1 : i64, tpu.core_type = #tpu.core_type<tc>, window_params = [{transform_indices = @transform_0, window_bounds = array<i64: 1, 8, 4>}, {pipeline_mode = #tpu.pipeline_mode<synchronous>, transform_indices = @transform_1, window_bounds = array<i64: 2, 4, 4>}, {pipeline_mode = #tpu.pipeline_mode<synchronous>, transform_indices = @transform_2, window_bounds = array<i64: 2, 4, 8>}, {transform_indices = @transform_3, window_bounds = array<i64: 1, 8, 8>}]} {
    %c0_i32 = arith.constant 0 : i32
    %0 = arith.cmpi eq, %arg1, %c0_i32 : i32
    %1 = arith.extui %0 : i1 to i32
    %c0_i32_0 = arith.constant 0 : i32
    %2 = arith.cmpi ne, %1, %c0_i32_0 : i32
    scf.if %2 {
      %c0_i32_35 = arith.constant 0 : i32
      %c8_i32_36 = arith.constant 8 : i32
      %75 = arith.muli %c0_i32_35, %c8_i32_36 : i32
      %76 = tpu.assume_multiple %75, 8 : i32
      %c0_37 = arith.constant 0 : index
      %77 = arith.index_cast %76 : i32 to index
      %c0_38 = arith.constant 0 : index
      %78 = vector.load %arg2[%c0_37, %77, %c0_38] : memref<1x8x4xf32, #tpu.memory_space<vmem>>, vector<1x8x4xf32>
      %c0_39 = arith.constant 0 : index
      %c0_40 = arith.constant 0 : index
      %c0_41 = arith.constant 0 : index
      %79 = vector.load %arg4[%c0_39, %c0_40, %c0_41] : memref<2x4x8xf32, #tpu.memory_space<vmem>>, vector<1x4x8xf32>
      %80 = vector.shape_cast %79 : vector<1x4x8xf32> to vector<4x8xf32>
      "tpu.trace_start"() <{level = 10 : i32, message = "bke,ef->bkf"}> : () -> ()
      %cst_42 = arith.constant dense<0.000000e+00> : vector<1x8x8xf32>
      %81 = tpu.matmul %78, %80, %cst_42 {dimension_numbers = #tpu.dot_dimension_numbers<[2], [0], [0, 1], [1], [0, 0, 0, 1, 1, 1], [], []>} : vector<1x8x4xf32>, vector<4x8xf32>, vector<1x8x8xf32> -> vector<1x8x8xf32>
      "tpu.trace_stop"() : () -> ()
      %c0_43 = arith.constant 0 : index
      %c0_44 = arith.constant 0 : index
      %82 = arith.index_cast %76 : i32 to index
      %c0_45 = arith.constant 0 : index
      %83 = vector.load %arg6[%c0_43, %c0_44, %82, %c0_45] : memref<2x1x8x8xf32, #tpu.memory_space<vmem>>, vector<1x1x8x8xf32>
      %84 = vector.shape_cast %83 : vector<1x1x8x8xf32> to vector<1x8x8xf32>
      %85 = vector.shape_cast %81 : vector<1x8x8xf32> to vector<1x1x8x8xf32>
      tpu.vector_store %arg6[%c0_43, %c0_44, %82, %c0_45], %85 {strides = array<i32>} : memref<2x1x8x8xf32, #tpu.memory_space<vmem>>, vector<1x1x8x8xf32>,
      %c1_46 = arith.constant 1 : index
      %c0_47 = arith.constant 0 : index
      %c0_48 = arith.constant 0 : index
      %86 = vector.load %arg4[%c1_46, %c0_47, %c0_48] : memref<2x4x8xf32, #tpu.memory_space<vmem>>, vector<1x4x8xf32>
      %87 = vector.shape_cast %86 : vector<1x4x8xf32> to vector<4x8xf32>
      "tpu.trace_start"() <{level = 10 : i32, message = "bke,ef->bkf"}> : () -> ()
      %cst_49 = arith.constant dense<0.000000e+00> : vector<1x8x8xf32>
      %88 = tpu.matmul %78, %87, %cst_49 {dimension_numbers = #tpu.dot_dimension_numbers<[2], [0], [0, 1], [1], [0, 0, 0, 1, 1, 1], [], []>} : vector<1x8x4xf32>, vector<4x8xf32>, vector<1x8x8xf32> -> vector<1x8x8xf32>
      "tpu.trace_stop"() : () -> ()
      %c1_50 = arith.constant 1 : index
      %c0_51 = arith.constant 0 : index
      %89 = arith.index_cast %76 : i32 to index
      %c0_52 = arith.constant 0 : index
      %90 = vector.load %arg6[%c1_50, %c0_51, %89, %c0_52] : memref<2x1x8x8xf32, #tpu.memory_space<vmem>>, vector<1x1x8x8xf32>
      %91 = vector.shape_cast %90 : vector<1x1x8x8xf32> to vector<1x8x8xf32>
      %92 = vector.shape_cast %88 : vector<1x8x8xf32> to vector<1x1x8x8xf32>
      tpu.vector_store %arg6[%c1_50, %c0_51, %89, %c0_52], %92 {strides = array<i32>} : memref<2x1x8x8xf32, #tpu.memory_space<vmem>>, vector<1x1x8x8xf32>,
      %c1_i32_53 = arith.constant 1 : i32
    } else {
    }
    %c8_i32 = arith.constant 8 : i32
    %3 = arith.muli %arg1, %c8_i32 : i32
    %4 = tpu.assume_multiple %3, 8 : i32
    %c0 = arith.constant 0 : index
    %5 = arith.index_cast %4 : i32 to index
    %c0_1 = arith.constant 0 : index
    %6 = vector.load %arg2[%c0, %5, %c0_1] : memref<1x8x4xf32, #tpu.memory_space<vmem>>, vector<1x8x4xf32>
    %c0_2 = arith.constant 0 : index
    %c0_3 = arith.constant 0 : index
    %c0_4 = arith.constant 0 : index
    %7 = vector.load %arg3[%c0_2, %c0_3, %c0_4] : memref<2x4x4xf32, #tpu.memory_space<vmem>>, vector<1x4x4xf32>
    %8 = vector.shape_cast %7 : vector<1x4x4xf32> to vector<4x4xf32>
    "tpu.trace_start"() <{level = 10 : i32, message = "bqe,ef->bqf"}> : () -> ()
    %cst = arith.constant dense<0.000000e+00> : vector<1x8x4xf32>
    %9 = tpu.matmul %6, %8, %cst {dimension_numbers = #tpu.dot_dimension_numbers<[2], [0], [0, 1], [1], [0, 0, 0, 1, 1, 1], [], []>} : vector<1x8x4xf32>, vector<4x4xf32>, vector<1x8x4xf32> -> vector<1x8x4xf32>
    "tpu.trace_stop"() : () -> ()
    %c1 = arith.constant 1 : index
    %c0_5 = arith.constant 0 : index
    %c0_6 = arith.constant 0 : index
    %10 = vector.load %arg3[%c1, %c0_5, %c0_6] : memref<2x4x4xf32, #tpu.memory_space<vmem>>, vector<1x4x4xf32>
    %11 = vector.shape_cast %10 : vector<1x4x4xf32> to vector<4x4xf32>
    "tpu.trace_start"() <{level = 10 : i32, message = "bqe,ef->bqf"}> : () -> ()
    %cst_7 = arith.constant dense<0.000000e+00> : vector<1x8x4xf32>
    %12 = tpu.matmul %6, %11, %cst_7 {dimension_numbers = #tpu.dot_dimension_numbers<[2], [0], [0, 1], [1], [0, 0, 0, 1, 1, 1], [], []>} : vector<1x8x4xf32>, vector<4x4xf32>, vector<1x8x4xf32> -> vector<1x8x4xf32>
    %cst_8 = arith.constant -1.000000e+30 : f32
    "tpu.trace_stop"() : () -> ()
    %13 = vector.broadcast %cst_8 : f32 to vector<1x8x1xf32>
    %cst_9 = arith.constant 0.000000e+00 : f32
    %14 = vector.broadcast %cst_9 : f32 to vector<1x8x1xf32>
    %cst_10 = arith.constant 0.000000e+00 : f32
    %15 = vector.broadcast %cst_10 : f32 to vector<1x8x8xf32>
    %cst_11 = arith.constant -1.000000e+30 : f32
    %16 = vector.broadcast %cst_11 : f32 to vector<1x8x1xf32>
    %cst_12 = arith.constant 0.000000e+00 : f32
    %17 = vector.broadcast %cst_12 : f32 to vector<1x8x1xf32>
    %cst_13 = arith.constant 0.000000e+00 : f32
    %18 = vector.broadcast %cst_13 : f32 to vector<1x8x8xf32>
    %c0_i32_14 = arith.constant 0 : i32
    %c8_i32_15 = arith.constant 8 : i32
    %19 = arith.muli %c0_i32_14, %c8_i32_15 : i32
    %20 = tpu.assume_multiple %19, 8 : i32
    %c0_16 = arith.constant 0 : index
    %21 = arith.index_cast %20 : i32 to index
    %c0_17 = arith.constant 0 : index
    %22 = vector.load %arg2[%c0_16, %21, %c0_17] : memref<1x8x4xf32, #tpu.memory_space<vmem>>, vector<1x8x4xf32>
    "tpu.trace_start"() <{level = 10 : i32, message = "bqe,bke->bqk"}> : () -> ()
    %cst_18 = arith.constant dense<0.000000e+00> : vector<1x8x8xf32>
    %23 = tpu.matmul %9, %22, %cst_18 {dimension_numbers = #tpu.dot_dimension_numbers<[2], [2], [1], [1], [0, 0, 0, 1, 1, 1], [0], [0]>} : vector<1x8x4xf32>, vector<1x8x4xf32>, vector<1x8x8xf32> -> vector<1x8x8xf32>
    "tpu.trace_stop"() : () -> ()
    %cst_19 = arith.constant dense<0xFF800000> : vector<1x8xf32>
    %24 = vector.multi_reduction <maximumf>, %23, %cst_19 [2] : vector<1x8x8xf32> to vector<1x8xf32>
    %25 = vector.shape_cast %24 : vector<1x8xf32> to vector<1x8x1xf32>
    %26 = arith.maximumf %13, %25 : vector<1x8x1xf32>
    %27 = arith.subf %13, %26 : vector<1x8x1xf32>
    %28 = math.exp %27 : vector<1x8x1xf32>
    %29 = vector.broadcast %26 : vector<1x8x1xf32> to vector<1x8x8xf32>
    %30 = arith.subf %23, %29 : vector<1x8x8xf32>
    %31 = math.exp %30 : vector<1x8x8xf32>
    %32 = arith.mulf %28, %14 : vector<1x8x1xf32>
    %cst_20 = arith.constant dense<0.000000e+00> : vector<1x8xf32>
    %33 = vector.multi_reduction <add>, %31, %cst_20 [2] : vector<1x8x8xf32> to vector<1x8xf32>
    %34 = vector.shape_cast %33 : vector<1x8xf32> to vector<1x8x1xf32>
    %35 = arith.addf %32, %34 : vector<1x8x1xf32>
    %c0_21 = arith.constant 0 : index
    %c0_22 = arith.constant 0 : index
    %36 = arith.index_cast %20 : i32 to index
    %c0_23 = arith.constant 0 : index
    %37 = vector.load %arg6[%c0_21, %c0_22, %36, %c0_23] : memref<2x1x8x8xf32, #tpu.memory_space<vmem>>, vector<1x1x8x8xf32>
    %38 = vector.shape_cast %37 : vector<1x1x8x8xf32> to vector<1x8x8xf32>
    %39 = arith.truncf %31 : vector<1x8x8xf32> to vector<1x8x8xbf16>
    %40 = arith.truncf %38 : vector<1x8x8xf32> to vector<1x8x8xbf16>
    "tpu.trace_start"() <{level = 10 : i32, message = "bqk,bkf->bqf"}> : () -> ()
    %cst_24 = arith.constant dense<0.000000e+00> : vector<1x8x8xf32>
    %41 = tpu.matmul %39, %40, %cst_24 {dimension_numbers = #tpu.dot_dimension_numbers<[2], [1], [1], [2], [0, 0, 0, 1, 1, 2], [0], [0]>} : vector<1x8x8xbf16>, vector<1x8x8xbf16>, vector<1x8x8xf32> -> vector<1x8x8xf32>
    "tpu.trace_stop"() : () -> ()
    %42 = vector.broadcast %28 : vector<1x8x1xf32> to vector<1x8x8xf32>
    %43 = arith.mulf %42, %15 : vector<1x8x8xf32>
    %44 = arith.addf %43, %41 : vector<1x8x8xf32>
    "tpu.trace_start"() <{level = 10 : i32, message = "bqe,bke->bqk"}> : () -> ()
    %cst_25 = arith.constant dense<0.000000e+00> : vector<1x8x8xf32>
    %45 = tpu.matmul %12, %22, %cst_25 {dimension_numbers = #tpu.dot_dimension_numbers<[2], [2], [1], [1], [0, 0, 0, 1, 1, 1], [0], [0]>} : vector<1x8x4xf32>, vector<1x8x4xf32>, vector<1x8x8xf32> -> vector<1x8x8xf32>
    "tpu.trace_stop"() : () -> ()
    %cst_26 = arith.constant dense<0xFF800000> : vector<1x8xf32>
    %46 = vector.multi_reduction <maximumf>, %45, %cst_26 [2] : vector<1x8x8xf32> to vector<1x8xf32>
    %47 = vector.shape_cast %46 : vector<1x8xf32> to vector<1x8x1xf32>
    %48 = arith.maximumf %16, %47 : vector<1x8x1xf32>
    %49 = arith.subf %16, %48 : vector<1x8x1xf32>
    %50 = math.exp %49 : vector<1x8x1xf32>
    %51 = vector.broadcast %48 : vector<1x8x1xf32> to vector<1x8x8xf32>
    %52 = arith.subf %45, %51 : vector<1x8x8xf32>
    %53 = math.exp %52 : vector<1x8x8xf32>
    %54 = arith.mulf %50, %17 : vector<1x8x1xf32>
    %cst_27 = arith.constant dense<0.000000e+00> : vector<1x8xf32>
    %55 = vector.multi_reduction <add>, %53, %cst_27 [2] : vector<1x8x8xf32> to vector<1x8xf32>
    %56 = vector.shape_cast %55 : vector<1x8xf32> to vector<1x8x1xf32>
    %57 = arith.addf %54, %56 : vector<1x8x1xf32>
    %c1_28 = arith.constant 1 : index
    %c0_29 = arith.constant 0 : index
    %58 = arith.index_cast %20 : i32 to index
    %c0_30 = arith.constant 0 : index
    %59 = vector.load %arg6[%c1_28, %c0_29, %58, %c0_30] : memref<2x1x8x8xf32, #tpu.memory_space<vmem>>, vector<1x1x8x8xf32>
    %60 = vector.shape_cast %59 : vector<1x1x8x8xf32> to vector<1x8x8xf32>
    %61 = arith.truncf %53 : vector<1x8x8xf32> to vector<1x8x8xbf16>
    %62 = arith.truncf %60 : vector<1x8x8xf32> to vector<1x8x8xbf16>
    "tpu.trace_start"() <{level = 10 : i32, message = "bqk,bkf->bqf"}> : () -> ()
    %cst_31 = arith.constant dense<0.000000e+00> : vector<1x8x8xf32>
    %63 = tpu.matmul %61, %62, %cst_31 {dimension_numbers = #tpu.dot_dimension_numbers<[2], [1], [1], [2], [0, 0, 0, 1, 1, 2], [0], [0]>} : vector<1x8x8xbf16>, vector<1x8x8xbf16>, vector<1x8x8xf32> -> vector<1x8x8xf32>
    "tpu.trace_stop"() : () -> ()
    %64 = vector.broadcast %50 : vector<1x8x1xf32> to vector<1x8x8xf32>
    %65 = arith.mulf %64, %18 : vector<1x8x8xf32>
    %66 = arith.addf %65, %63 : vector<1x8x8xf32>
    %c1_i32 = arith.constant 1 : i32
    %67 = tpu.reciprocal %35 : vector<1x8x1xf32> -> vector<1x8x1xf32>
    %68 = vector.broadcast %67 : vector<1x8x1xf32> to vector<1x8x8xf32>
    %69 = arith.mulf %44, %68 : vector<1x8x8xf32>
    %70 = tpu.reciprocal %57 : vector<1x8x1xf32> -> vector<1x8x1xf32>
    %71 = vector.broadcast %70 : vector<1x8x1xf32> to vector<1x8x8xf32>
    %72 = arith.mulf %66, %71 : vector<1x8x8xf32>
    %73 = arith.addf %69, %72 : vector<1x8x8xf32>
    %c0_32 = arith.constant 0 : index
    %c0_33 = arith.constant 0 : index
    %c0_34 = arith.constant 0 : index
    %74 = vector.load %arg5[%c0_32, %c0_33, %c0_34] : memref<1x8x8xf32, #tpu.memory_space<vmem>>, vector<1x8x8xf32>
    tpu.vector_store %arg5[%c0_32, %c0_33, %c0_34], %73 {strides = array<i32>} : memref<1x8x8xf32, #tpu.memory_space<vmem>>, vector<1x8x8xf32>,
    return
  }
  func.func @transform_0(%arg0: i32, %arg1: i32) -> (i32, i32, i32) {
    %c0_i32 = arith.constant 0 : i32
    %c0_i32_0 = arith.constant 0 : i32
    %c0_i32_1 = arith.constant 0 : i32
    return %arg0, %c0_i32, %c0_i32_0 : i32, i32, i32
  }
  func.func @transform_1(%arg0: i32, %arg1: i32) -> (i32, i32, i32) {
    %c0_i32 = arith.constant 0 : i32
    %c0_i32_0 = arith.constant 0 : i32
    %c0_i32_1 = arith.constant 0 : i32
    %c0_i32_2 = arith.constant 0 : i32
    return %c0_i32, %c0_i32_0, %c0_i32_1 : i32, i32, i32
  }
  func.func @transform_2(%arg0: i32, %arg1: i32) -> (i32, i32, i32) {
    %c0_i32 = arith.constant 0 : i32
    %c0_i32_0 = arith.constant 0 : i32
    %c0_i32_1 = arith.constant 0 : i32
    %c0_i32_2 = arith.constant 0 : i32
    return %c0_i32, %c0_i32_0, %c0_i32_1 : i32, i32, i32
  }
  func.func @transform_3(%arg0: i32, %arg1: i32) -> (i32, i32, i32) {
    %c0_i32 = arith.constant 0 : i32
    %c0_i32_0 = arith.constant 0 : i32
    return %arg0, %arg1, %c0_i32 : i32, i32, i32
  }
}

</mosaic_0001>

<llo_original>
// kernel: tpu_custom_call.1
$region0: #{tpu_custom_call.1}
  #allocation0 [shape = 'u32[]', space=smem, size = 0x4, offset = 0x4, fixed_abs, tag = 'smem constant byte address 0x4 - core index']
  #allocation1 [shape = 'u32[144,128]{1,0:T(1,128)}', space=vmem, size = 0x12000, scoped, tag = 'internal scratch']
  #allocation2 [shape = 'f32[2,1,8,8]{3,2,1,0:T(8,128)}', space=vmem, size = 0x2000, scoped, tag = 'scratch operand']
  %s0 = inlined_call_operand.vmem [shape: f32[2,8,4], index: 0, kind: input, shape index: {}]
  %s1 = inlined_call_operand.vmem [shape: f32[2,4,4], index: 1, kind: input, shape index: {}]
  %s2 = inlined_call_operand.vmem [shape: f32[2,4,8], index: 2, kind: input, shape index: {}]
  %s3 = inlined_call_operand.hbm [shape: f32[2,8,8], index: 3, kind: output, shape index: {}]
  %s4 = sld [smem:[#allocation0]]
  $region49: #{tpu_custom_call.1} parent=0
    _
  %s6 = ssub.s32 1, %s4
  %s7 = scalar_select 0, %s6, %s4
  $region1: #{tpu_custom_call.1} parent=0
    #allocation3 [shape = 'u8[8192]{0}', space=vmem, size = 0x2000, scoped, tag = 'output window, operand 0']
    #allocation4 [shape = 's32[2]{0}', space=sflag, size = 0x8, scoped, tag = 'scoped memory for tpu_custom_call.1']
    %8 = vsyncpa [#allocation4], 0
    %s9 = scalar_lea.sflag [#allocation4], 1
    %10 = vsyncpa %s9, 0
    loop: start=0, step=1, limit=4
    $region2: #{tpu_custom_call.1} parent=1 // loop_pre_header
      _
    $region3: #{tpu_custom_call.1} parent=1 // loop_header
      %s12 = sphi 0, %s16
      %p13 = scmp.ge.s32.totalorder %s12, 4
      %s19 = sphi 0, %s31
      %s20 = sphi 0, %s27
      %s21 = sphi 0, %s19
      %s22 = sphi 0, %s20
      %s23 = sphi 0, %s21
      %s24 = sphi 0, %s22
      %s34 = sphi 0, %s36
      %s37 = sphi 0, %s34
      %s38 = sphi 0, %s37
      %s54 = sphi 0, %s38
      %s58 = sphi 0, %s58
      %s60 = sphi 0, %s58
      %s61 = sphi 0, %s60
      %s75 = sphi 0, %s61
      %s79 = sphi 0, %s79
      %s81 = sphi 0, %s79
      %s82 = sphi 0, %s81
      %s96 = sphi 0, %s82
      %s104 = sphi 0, %s106
      %s107 = sphi 0, %s104
      %s108 = sphi 0, %s107
      %s124 = sphi 0, %s108
    $region4: #{tpu_custom_call.1} parent=1 // loop_header_branch
      %15 = sbr.rel (%p13) target = $region8
    $region5: #{tpu_custom_call.1} parent=1 // loop_body
      %s17 = ssub.s32 %s12, 1
      %s18 = ssub.s32 %s12, 2
      %s25 = sadd.s32 1, %s20
      %p26 = scmp.ge.s32.totalorder %s25, 1
      %s27 = scalar_select %p26, 0, %s25
      %s28 = sadd.s32 1, %s19
      %s29 = scalar_select %p26, %s28, %s19
      %p30 = scmp.ge.s32.totalorder %s29, 2
      %s31 = scalar_select %p30, 0, %s29
      %s32 = ssub.s32 %s19, %s31
      %p33 = scmp.eq.s32.totalorder %s32, 0
      %s35 = sadd.s32 %s34, 1
      %s36 = scalar_select %p33, %s34, %s35
      %p39 = pneg %p33
      %p40 = scmp.eq.s32.totalorder %s12, 1
      %p41 = por %p39, %p40
      %p42 = scmp.ne.s32.totalorder %s34, %s37
      %p43 = scmp.eq.s32.totalorder %s12, 0
      %p44 = por %p42, %p43
      %p45 = scmp.ne.s32.totalorder %s34, %s37
      %p46 = scmp.eq.s32.totalorder %s17, 1
      %p47 = por %p45, %p46
      %p48 = scmp.ne.s32.totalorder %s37, %s38
      %p49 = scmp.eq.s32.totalorder %s17, 0
      %p50 = por %p48, %p49
      %p51 = scmp.ne.s32.totalorder %s37, %s38
      %p52 = scmp.eq.s32.totalorder %s18, 1
      %p53 = por %p51, %p52
      %p55 = scmp.ne.s32.totalorder %s38, %s54
      %p56 = scmp.eq.s32.totalorder %s18, 0
      %p57 = por %p55, %p56
      %s59 = sadd.s32 %s58, 1
      %p62 = scmp.eq.s32.totalorder %s12, 1
      %p63 = scmp.ne.s32.totalorder %s58, %s60
      %p64 = scmp.eq.s32.totalorder %s12, 0
      %p65 = por %p63, %p64
      %p66 = scmp.ne.s32.totalorder %s58, %s60
      %p67 = scmp.eq.s32.totalorder %s17, 1
      %p68 = por %p66, %p67
      %p69 = scmp.ne.s32.totalorder %s60, %s61
      %p70 = scmp.eq.s32.totalorder %s17, 0
      %p71 = por %p69, %p70
      %p72 = scmp.ne.s32.totalorder %s60, %s61
      %p73 = scmp.eq.s32.totalorder %s18, 1
      %p74 = por %p72, %p73
      %p76 = scmp.ne.s32.totalorder %s61, %s75
      %p77 = scmp.eq.s32.totalorder %s18, 0
      %p78 = por %p76, %p77
      %s80 = sadd.s32 %s79, 1
      %p83 = scmp.eq.s32.totalorder %s12, 1
      %p84 = scmp.ne.s32.totalorder %s79, %s81
      %p85 = scmp.eq.s32.totalorder %s12, 0
      %p86 = por %p84, %p85
      %p87 = scmp.ne.s32.totalorder %s79, %s81
      %p88 = scmp.eq.s32.totalorder %s17, 1
      %p89 = por %p87, %p88
      %p90 = scmp.ne.s32.totalorder %s81, %s82
      %p91 = scmp.eq.s32.totalorder %s17, 0
      %p92 = por %p90, %p91
      %p93 = scmp.ne.s32.totalorder %s81, %s82
      %p94 = scmp.eq.s32.totalorder %s18, 1
      %p95 = por %p93, %p94
      %p97 = scmp.ne.s32.totalorder %s82, %s96
      %p98 = scmp.eq.s32.totalorder %s18, 0
      %p99 = por %p97, %p98
      %s100 = ssub.s32 %s19, %s31
      %s101 = ssub.s32 %s20, %s27
      %s102 = sor.u32 %s100, %s101
      %p103 = scmp.eq.s32.totalorder %s102, 0
      %s105 = sadd.s32 %s104, 1
      %s106 = scalar_select %p103, %s104, %s105
      %p109 = pneg %p103
      %p110 = scmp.eq.s32.totalorder %s12, 1
      %p111 = por %p109, %p110
      %p112 = scmp.ne.s32.totalorder %s104, %s107
      %p113 = scmp.eq.s32.totalorder %s12, 0
      %p114 = por %p112, %p113
      %p115 = scmp.ne.s32.totalorder %s104, %s107
      %p116 = scmp.eq.s32.totalorder %s17, 1
      %p117 = por %p115, %p116
      %p118 = scmp.ne.s32.totalorder %s107, %s108
      %p119 = scmp.eq.s32.totalorder %s17, 0
      %p120 = por %p118, %p119
      %p121 = scmp.ne.s32.totalorder %s107, %s108
      %p122 = scmp.eq.s32.totalorder %s18, 1
      %p123 = por %p121, %p122
      %p125 = scmp.ne.s32.totalorder %s108, %s124
      %p126 = scmp.eq.s32.totalorder %s18, 0
      %p127 = por %p125, %p126
      %p128 = scmp.le.s32.totalorder 1, %s12
      %p129 = scmp.lt.s32.totalorder %s12, 3
      %p130 = pnand %p128, %p129
      %p131 = pneg %p130
      // Predicated region
      $region9: #{tpu_custom_call.1} parent=5 // pred_check
        _
      $region10: #{tpu_custom_call.1} parent=5 // pred_check_branch
        %133 = sbr.rel (%p130) target = $region12
      $region11: #{tpu_custom_call.1} parent=5 // pred_region
        %s134 = ssub.s32 %s12, 1
        // Predicated region
        $region13: #{tpu_custom_call.1} parent=11 // pred_check
          %p135 = pneg %p71
        $region14: #{tpu_custom_call.1} parent=11 // pred_check_branch
          %137 = sbr.rel (%p135) target = $region16
        $region15: #{tpu_custom_call.1} parent=11 // pred_region
          _
        $region16: #{tpu_custom_call.1} parent=11 // pred_fallthru
          _
        // Predicated region
        $region17: #{tpu_custom_call.1} parent=11 // pred_check
          %p138 = pneg %p92
        $region18: #{tpu_custom_call.1} parent=11 // pred_check_branch
          %140 = sbr.rel (%p138) target = $region20
        $region19: #{tpu_custom_call.1} parent=11 // pred_region
          _
        $region20: #{tpu_custom_call.1} parent=11 // pred_fallthru
          _
      $region12: #{tpu_custom_call.1} parent=5 // pred_fallthru
        _
      %p141 = scmp.lt.s32.totalorder %s12, 2
      // Predicated region
      $region21: #{tpu_custom_call.1} parent=5 // pred_check
        %p142 = pneg %p141
      $region22: #{tpu_custom_call.1} parent=5 // pred_check_branch
        %144 = sbr.rel (%p142) target = $region24
      $region23: #{tpu_custom_call.1} parent=5 // pred_region
        // Predicated region
        $region25: #{tpu_custom_call.1} parent=23 // pred_check
          %p145 = pneg %p44
        $region26: #{tpu_custom_call.1} parent=23 // pred_check_branch
          %147 = sbr.rel (%p145) target = $region28
        $region27: #{tpu_custom_call.1} parent=23 // pred_region
          %p148 = scmp.lt.s32.totalorder %s19, 1
          %s149 = scalar_select %p148, %s19, 1
          %s150 = smul.addr %s149, 8
          %s151 = scalar_lea.vmem %s0, %s150
        $region28: #{tpu_custom_call.1} parent=23 // pred_fallthru
          _
      $region24: #{tpu_custom_call.1} parent=5 // pred_fallthru
        _
      %p152 = scmp.le.s32.totalorder 1, %s12
      %p153 = scmp.lt.s32.totalorder %s12, 3
      %p154 = pnand %p152, %p153
      %p155 = pneg %p154
      // Predicated region
      $region29: #{tpu_custom_call.1} parent=5 // pred_check
        _
      $region30: #{tpu_custom_call.1} parent=5 // pred_check_branch
        %157 = sbr.rel (%p154) target = $region32
      $region31: #{tpu_custom_call.1} parent=5 // pred_region
        %s158 = ssub.s32 %s12, 1
        %p159 = scmp.lt.s32.totalorder %s21, 1
        %s160 = scalar_select %p159, %s21, 1
        %s161 = smul.addr %s160, 8
        %s162 = scalar_lea.vmem %s0, %s161
        %p163 = pneg %p50
        %p164 = pneg %p47
        %p165 = pneg %p71
        %p166 = pneg %p68
        %p167 = pneg %p92
        %p168 = pneg %p89
        %p169 = pneg %p120
        %p170 = pneg %p117
        %s171 = sand.u32 %s107, 1
        %s172 = scalar_lea.sflag [#allocation4], %s171
        %s173 = sand.u32 %s107, 1
        %s174 = smul.addr %s173, 8
        %s175 = scalar_lea.vmem [#allocation3], %s174
        %p176 = scmp.lt.s32.totalorder %s21, 1
        %s177 = scalar_select %p176, %s21, 1
        %s178 = smul.addr %s177, 8
        %s179 = scalar_lea.vmem %s0, %s178
        %p181 = scmp.eq.s32.totalorder %s22, 0
        // Predicated region
        $region33: #{tpu_custom_call.1} parent=31 // pred_check
          %p182 = pneg %p181
        $region34: #{tpu_custom_call.1} parent=31 // pred_check_branch
          %184 = sbr.rel (%p182) target = $region36
        $region35: #{tpu_custom_call.1} parent=31 // pred_region
          %v185 = vld [vmem:[%s179] sm:$0xff]
          %v186 = vld [vmem:[%s2] sm:$0xf]
          %vm187 = vcmask 31744
          %v189 = vsel %vm187, %v185, 0
          %vm191 = vcmask 1043456
          %v193 = vsel %vm191, %v186, 0
          %195 = vmatprep.subr.mxu0 0.0
          %196 = vmatpush1.msra.mxu0 0.0
          %197 = vmatprep.subr.mxu0 0.0
          %198 = vmatpush1.msra.mxu0 0.0
          %199 = vmatprep.subr.mxu0 0.0
          %200 = vmatpush1.msra.mxu0 0.0
          %201 = vmatprep.subr.mxu0 0.0
          %202 = vmatpush1.msra.mxu0 0.0
          %203 = vmatprep.subr.mxu0 0.0
          %204 = vmatpush1.msra.mxu0 0.0
          %205 = vmatprep.subr.mxu0 0.0
          %206 = vmatpush1.msra.mxu0 0.0
          %207 = vmatprep.subr.mxu0 0.0
          %208 = vmatpush1.msra.mxu0 0.0
          %209 = vmatprep.subr.mxu0 0.0
          %210 = vmatpush1.msra.mxu0 0.0
          %211 = vmatprep.subr.mxu0 0.0
          %212 = vmatpush1.msra.mxu0 0.0
          %213 = vmatprep.subr.mxu0 0.0
          %214 = vmatpush1.msra.mxu0 0.0
          %215 = vmatprep.subr.mxu0 0.0
          %216 = vmatpush1.msra.mxu0 0.0
          %217 = vmatprep.subr.mxu0 0.0
          %218 = vmatpush1.msra.mxu0 0.0
          %219 = vmatprep.subr.mxu0 0.0
          %220 = vmatpush1.msra.mxu0 0.0
          %221 = vmatprep.subr.mxu0 0.0
          %222 = vmatpush1.msra.mxu0 0.0
          %223 = vmatprep.subr.mxu0 0.0
          %224 = vmatpush1.msra.mxu0 0.0
          %225 = vmatprep.subr.mxu0 0.0
          %226 = vmatpush1.msra.mxu0 %v193
          %227 = vmatprep.subr.mxu0 0.0
          %228 = vmatpush2.msra.mxu0 0.0
          %229 = vmatprep.subr.mxu0 0.0
          %230 = vmatpush2.msra.mxu0 0.0
          %231 = vmatprep.subr.mxu0 0.0
          %232 = vmatpush2.msra.mxu0 0.0
          %233 = vmatprep.subr.mxu0 0.0
          %234 = vmatpush2.msra.mxu0 0.0
          %235 = vmatprep.subr.mxu0 0.0
          %236 = vmatpush2.msra.mxu0 0.0
          %237 = vmatprep.subr.mxu0 0.0
          %238 = vmatpush2.msra.mxu0 0.0
          %239 = vmatprep.subr.mxu0 0.0
          %240 = vmatpush2.msra.mxu0 0.0
          %241 = vmatprep.subr.mxu0 0.0
          %242 = vmatpush2.msra.mxu0 0.0
          %243 = vmatprep.subr.mxu0 0.0
          %244 = vmatpush2.msra.mxu0 0.0
          %245 = vmatprep.subr.mxu0 0.0
          %246 = vmatpush2.msra.mxu0 0.0
          %247 = vmatprep.subr.mxu0 0.0
          %248 = vmatpush2.msra.mxu0 0.0
          %249 = vmatprep.subr.mxu0 0.0
          %250 = vmatpush2.msra.mxu0 0.0
          %251 = vmatprep.subr.mxu0 0.0
          %252 = vmatpush2.msra.mxu0 0.0
          %253 = vmatprep.subr.mxu0 0.0
          %254 = vmatpush2.msra.mxu0 0.0
          %255 = vmatprep.subr.mxu0 0.0
          %256 = vmatpush2.msra.mxu0 0.0
          %257 = vmatprep.subr.mxu0 0.0
          %258 = vmatpush2.msra.mxu0 0.0
          %259 = vmatprep.mubr.f32.mxu0 0.0
          %260 = vmatmul.mubr.f32.gmra.mxu0 %v189
          %v261 = vpop.f32.mrf.mxu0
          %v262 = vadd.f32 0.0, %v261
          %v263 = vpop.f32.mrf.mxu0
          %264 = vdwg.mxu0
          %vm265 = vcmask 64512
          %266 = vst.msk [vmem:[#allocation2] sm:$0xff] %vm265, %v262
          %s267 = scalar_lea.vmem %s2, 4
          %v268 = vld [vmem:[%s267] sm:$0xf]
          %v270 = vsel %vm191, %v268, 0
          %272 = vmatprep.subr.mxu0 0.0
          %273 = vmatpush1.msra.mxu0 0.0
          %274 = vmatprep.subr.mxu0 0.0
          %275 = vmatpush1.msra.mxu0 0.0
          %276 = vmatprep.subr.mxu0 0.0
          %277 = vmatpush1.msra.mxu0 0.0
          %278 = vmatprep.subr.mxu0 0.0
          %279 = vmatpush1.msra.mxu0 0.0
          %280 = vmatprep.subr.mxu0 0.0
          %281 = vmatpush1.msra.mxu0 0.0
          %282 = vmatprep.subr.mxu0 0.0
          %283 = vmatpush1.msra.mxu0 0.0
          %284 = vmatprep.subr.mxu0 0.0
          %285 = vmatpush1.msra.mxu0 0.0
          %286 = vmatprep.subr.mxu0 0.0
          %287 = vmatpush1.msra.mxu0 0.0
          %288 = vmatprep.subr.mxu0 0.0
          %289 = vmatpush1.msra.mxu0 0.0
          %290 = vmatprep.subr.mxu0 0.0
          %291 = vmatpush1.msra.mxu0 0.0
          %292 = vmatprep.subr.mxu0 0.0
          %293 = vmatpush1.msra.mxu0 0.0
          %294 = vmatprep.subr.mxu0 0.0
          %295 = vmatpush1.msra.mxu0 0.0
          %296 = vmatprep.subr.mxu0 0.0
          %297 = vmatpush1.msra.mxu0 0.0
          %298 = vmatprep.subr.mxu0 0.0
          %299 = vmatpush1.msra.mxu0 0.0
          %300 = vmatprep.subr.mxu0 0.0
          %301 = vmatpush1.msra.mxu0 0.0
          %302 = vmatprep.subr.mxu0 0.0
          %303 = vmatpush1.msra.mxu0 %v270
          %304 = vmatprep.subr.mxu0 0.0
          %305 = vmatpush2.msra.mxu0 0.0
          %306 = vmatprep.subr.mxu0 0.0
          %307 = vmatpush2.msra.mxu0 0.0
          %308 = vmatprep.subr.mxu0 0.0
          %309 = vmatpush2.msra.mxu0 0.0
          %310 = vmatprep.subr.mxu0 0.0
          %311 = vmatpush2.msra.mxu0 0.0
          %312 = vmatprep.subr.mxu0 0.0
          %313 = vmatpush2.msra.mxu0 0.0
          %314 = vmatprep.subr.mxu0 0.0
          %315 = vmatpush2.msra.mxu0 0.0
          %316 = vmatprep.subr.mxu0 0.0
          %317 = vmatpush2.msra.mxu0 0.0
          %318 = vmatprep.subr.mxu0 0.0
          %319 = vmatpush2.msra.mxu0 0.0
          %320 = vmatprep.subr.mxu0 0.0
          %321 = vmatpush2.msra.mxu0 0.0
          %322 = vmatprep.subr.mxu0 0.0
          %323 = vmatpush2.msra.mxu0 0.0
          %324 = vmatprep.subr.mxu0 0.0
          %325 = vmatpush2.msra.mxu0 0.0
          %326 = vmatprep.subr.mxu0 0.0
          %327 = vmatpush2.msra.mxu0 0.0
          %328 = vmatprep.subr.mxu0 0.0
          %329 = vmatpush2.msra.mxu0 0.0
          %330 = vmatprep.subr.mxu0 0.0
          %331 = vmatpush2.msra.mxu0 0.0
          %332 = vmatprep.subr.mxu0 0.0
          %333 = vmatpush2.msra.mxu0 0.0
          %334 = vmatprep.subr.mxu0 0.0
          %335 = vmatpush2.msra.mxu0 0.0
          %336 = vmatprep.mubr.f32.mxu0 0.0
          %337 = vmatmul.mubr.f32.gmra.mxu0 %v189
          %v338 = vpop.f32.mrf.mxu0
          %v339 = vadd.f32 0.0, %v338
          %v340 = vpop.f32.mrf.mxu0
          %341 = vdwg.mxu0
          %s342 = sadd.s32 0, 8
          %s343 = scalar_lea.vmem [#allocation2], %s342
          %344 = vst.msk [vmem:[%s343] sm:$0xff] %vm265, %v339
        $region36: #{tpu_custom_call.1} parent=31 // pred_fallthru
          _
        %s345 = smul.u32 %s22, 8
        %s346 = scalar_lea.vmem %s179, %s345
        %v347 = vld [vmem:[%s346] sm:$0xff]
        %v348 = vld [vmem:[%s1] sm:$0xf]
        %vm349 = vcmask 31744
        %v351 = vsel %vm349, %v347, 0
        %vm353 = vcmask 1043456
        %v355 = vsel %vm353, %v348, 0
        %357 = vmatprep.subr.mxu0 0.0
        %358 = vmatpush1.msra.mxu0 0.0
        %359 = vmatprep.subr.mxu0 0.0
        %360 = vmatpush1.msra.mxu0 0.0
        %361 = vmatprep.subr.mxu0 0.0
        %362 = vmatpush1.msra.mxu0 0.0
        %363 = vmatprep.subr.mxu0 0.0
        %364 = vmatpush1.msra.mxu0 0.0
        %365 = vmatprep.subr.mxu0 0.0
        %366 = vmatpush1.msra.mxu0 0.0
        %367 = vmatprep.subr.mxu0 0.0
        %368 = vmatpush1.msra.mxu0 0.0
        %369 = vmatprep.subr.mxu0 0.0
        %370 = vmatpush1.msra.mxu0 0.0
        %371 = vmatprep.subr.mxu0 0.0
        %372 = vmatpush1.msra.mxu0 0.0
        %373 = vmatprep.subr.mxu0 0.0
        %374 = vmatpush1.msra.mxu0 0.0
        %375 = vmatprep.subr.mxu0 0.0
        %376 = vmatpush1.msra.mxu0 0.0
        %377 = vmatprep.subr.mxu0 0.0
        %378 = vmatpush1.msra.mxu0 0.0
        %379 = vmatprep.subr.mxu0 0.0
        %380 = vmatpush1.msra.mxu0 0.0
        %381 = vmatprep.subr.mxu0 0.0
        %382 = vmatpush1.msra.mxu0 0.0
        %383 = vmatprep.subr.mxu0 0.0
        %384 = vmatpush1.msra.mxu0 0.0
        %385 = vmatprep.subr.mxu0 0.0
        %386 = vmatpush1.msra.mxu0 0.0
        %387 = vmatprep.subr.mxu0 0.0
        %388 = vmatpush1.msra.mxu0 %v355
        %389 = vmatprep.subr.mxu0 0.0
        %390 = vmatpush2.msra.mxu0 0.0
        %391 = vmatprep.subr.mxu0 0.0
        %392 = vmatpush2.msra.mxu0 0.0
        %393 = vmatprep.subr.mxu0 0.0
        %394 = vmatpush2.msra.mxu0 0.0
        %395 = vmatprep.subr.mxu0 0.0
        %396 = vmatpush2.msra.mxu0 0.0
        %397 = vmatprep.subr.mxu0 0.0
        %398 = vmatpush2.msra.mxu0 0.0
        %399 = vmatprep.subr.mxu0 0.0
        %400 = vmatpush2.msra.mxu0 0.0
        %401 = vmatprep.subr.mxu0 0.0
        %402 = vmatpush2.msra.mxu0 0.0
        %403 = vmatprep.subr.mxu0 0.0
        %404 = vmatpush2.msra.mxu0 0.0
        %405 = vmatprep.subr.mxu0 0.0
        %406 = vmatpush2.msra.mxu0 0.0
        %407 = vmatprep.subr.mxu0 0.0
        %408 = vmatpush2.msra.mxu0 0.0
        %409 = vmatprep.subr.mxu0 0.0
        %410 = vmatpush2.msra.mxu0 0.0
        %411 = vmatprep.subr.mxu0 0.0
        %412 = vmatpush2.msra.mxu0 0.0
        %413 = vmatprep.subr.mxu0 0.0
        %414 = vmatpush2.msra.mxu0 0.0
        %415 = vmatprep.subr.mxu0 0.0
        %416 = vmatpush2.msra.mxu0 0.0
        %417 = vmatprep.subr.mxu0 0.0
        %418 = vmatpush2.msra.mxu0 0.0
        %419 = vmatprep.subr.mxu0 0.0
        %420 = vmatpush2.msra.mxu0 0.0
        %421 = vmatprep.mubr.f32.mxu0 0.0
        %422 = vmatmul.mubr.f32.gmra.mxu0 %v351
        %v423 = vpop.f32.mrf.mxu0
        %v424 = vadd.f32 0.0, %v423
        %v425 = vpop.f32.mrf.mxu0
        %426 = vdwg.mxu0
        %s427 = scalar_lea.vmem %s1, 4
        %v428 = vld [vmem:[%s427] sm:$0xf]
        %v430 = vsel %vm353, %v428, 0
        %432 = vmatprep.subr.mxu0 0.0
        %433 = vmatpush1.msra.mxu0 0.0
        %434 = vmatprep.subr.mxu0 0.0
        %435 = vmatpush1.msra.mxu0 0.0
        %436 = vmatprep.subr.mxu0 0.0
        %437 = vmatpush1.msra.mxu0 0.0
        %438 = vmatprep.subr.mxu0 0.0
        %439 = vmatpush1.msra.mxu0 0.0
        %440 = vmatprep.subr.mxu0 0.0
        %441 = vmatpush1.msra.mxu0 0.0
        %442 = vmatprep.subr.mxu0 0.0
        %443 = vmatpush1.msra.mxu0 0.0
        %444 = vmatprep.subr.mxu0 0.0
        %445 = vmatpush1.msra.mxu0 0.0
        %446 = vmatprep.subr.mxu0 0.0
        %447 = vmatpush1.msra.mxu0 0.0
        %448 = vmatprep.subr.mxu0 0.0
        %449 = vmatpush1.msra.mxu0 0.0
        %450 = vmatprep.subr.mxu0 0.0
        %451 = vmatpush1.msra.mxu0 0.0
        %452 = vmatprep.subr.mxu0 0.0
        %453 = vmatpush1.msra.mxu0 0.0
        %454 = vmatprep.subr.mxu0 0.0
        %455 = vmatpush1.msra.mxu0 0.0
        %456 = vmatprep.subr.mxu0 0.0
        %457 = vmatpush1.msra.mxu0 0.0
        %458 = vmatprep.subr.mxu0 0.0
        %459 = vmatpush1.msra.mxu0 0.0
        %460 = vmatprep.subr.mxu0 0.0
        %461 = vmatpush1.msra.mxu0 0.0
        %462 = vmatprep.subr.mxu0 0.0
        %463 = vmatpush1.msra.mxu0 %v430
        %464 = vmatprep.subr.mxu0 0.0
        %465 = vmatpush2.msra.mxu0 0.0
        %466 = vmatprep.subr.mxu0 0.0
        %467 = vmatpush2.msra.mxu0 0.0
        %468 = vmatprep.subr.mxu0 0.0
        %469 = vmatpush2.msra.mxu0 0.0
        %470 = vmatprep.subr.mxu0 0.0
        %471 = vmatpush2.msra.mxu0 0.0
        %472 = vmatprep.subr.mxu0 0.0
        %473 = vmatpush2.msra.mxu0 0.0
        %474 = vmatprep.subr.mxu0 0.0
        %475 = vmatpush2.msra.mxu0 0.0
        %476 = vmatprep.subr.mxu0 0.0
        %477 = vmatpush2.msra.mxu0 0.0
        %478 = vmatprep.subr.mxu0 0.0
        %479 = vmatpush2.msra.mxu0 0.0
        %480 = vmatprep.subr.mxu0 0.0
        %481 = vmatpush2.msra.mxu0 0.0
        %482 = vmatprep.subr.mxu0 0.0
        %483 = vmatpush2.msra.mxu0 0.0
        %484 = vmatprep.subr.mxu0 0.0
        %485 = vmatpush2.msra.mxu0 0.0
        %486 = vmatprep.subr.mxu0 0.0
        %487 = vmatpush2.msra.mxu0 0.0
        %488 = vmatprep.subr.mxu0 0.0
        %489 = vmatpush2.msra.mxu0 0.0
        %490 = vmatprep.subr.mxu0 0.0
        %491 = vmatpush2.msra.mxu0 0.0
        %492 = vmatprep.subr.mxu0 0.0
        %493 = vmatpush2.msra.mxu0 0.0
        %494 = vmatprep.subr.mxu0 0.0
        %495 = vmatpush2.msra.mxu0 0.0
        %496 = vmatprep.mubr.f32.mxu0 0.0
        %497 = vmatmul.mubr.f32.gmra.mxu0 %v351
        %v498 = vpop.f32.mrf.mxu0
        %v499 = vadd.f32 0.0, %v498
        %v500 = vpop.f32.mrf.mxu0
        %501 = vdwg.mxu0
        %v502 = vld [vmem:[%s179] sm:$0xff]
        %v504 = vsel %vm349, %v424, 0
        %v507 = vsel %vm349, %v502, 0
        %509 = vmatprep.subr.mxu0 0.0
        %510 = vmatpush1.xpose.msra.mxu0 0.0
        %511 = vmatprep.subr.mxu0 0.0
        %512 = vmatpush1.xpose.msra.mxu0 0.0
        %513 = vmatprep.subr.mxu0 0.0
        %514 = vmatpush1.xpose.msra.mxu0 0.0
        %515 = vmatprep.subr.mxu0 0.0
        %516 = vmatpush1.xpose.msra.mxu0 0.0
        %517 = vmatprep.subr.mxu0 0.0
        %518 = vmatpush1.xpose.msra.mxu0 0.0
        %519 = vmatprep.subr.mxu0 0.0
        %520 = vmatpush1.xpose.msra.mxu0 0.0
        %521 = vmatprep.subr.mxu0 0.0
        %522 = vmatpush1.xpose.msra.mxu0 0.0
        %523 = vmatprep.subr.mxu0 0.0
        %524 = vmatpush1.xpose.msra.mxu0 0.0
        %525 = vmatprep.subr.mxu0 0.0
        %526 = vmatpush1.xpose.msra.mxu0 0.0
        %527 = vmatprep.subr.mxu0 0.0
        %528 = vmatpush1.xpose.msra.mxu0 0.0
        %529 = vmatprep.subr.mxu0 0.0
        %530 = vmatpush1.xpose.msra.mxu0 0.0
        %531 = vmatprep.subr.mxu0 0.0
        %532 = vmatpush1.xpose.msra.mxu0 0.0
        %533 = vmatprep.subr.mxu0 0.0
        %534 = vmatpush1.xpose.msra.mxu0 0.0
        %535 = vmatprep.subr.mxu0 0.0
        %536 = vmatpush1.xpose.msra.mxu0 0.0
        %537 = vmatprep.subr.mxu0 0.0
        %538 = vmatpush1.xpose.msra.mxu0 0.0
        %539 = vmatprep.subr.mxu0 0.0
        %540 = vmatpush1.xpose.msra.mxu0 %v507
        %541 = vmatprep.subr.mxu0 0.0
        %542 = vmatpush2.xpose.msra.mxu0 0.0
        %543 = vmatprep.subr.mxu0 0.0
        %544 = vmatpush2.xpose.msra.mxu0 0.0
        %545 = vmatprep.subr.mxu0 0.0
        %546 = vmatpush2.xpose.msra.mxu0 0.0
        %547 = vmatprep.subr.mxu0 0.0
        %548 = vmatpush2.xpose.msra.mxu0 0.0
        %549 = vmatprep.subr.mxu0 0.0
        %550 = vmatpush2.xpose.msra.mxu0 0.0
        %551 = vmatprep.subr.mxu0 0.0
        %552 = vmatpush2.xpose.msra.mxu0 0.0
        %553 = vmatprep.subr.mxu0 0.0
        %554 = vmatpush2.xpose.msra.mxu0 0.0
        %555 = vmatprep.subr.mxu0 0.0
        %556 = vmatpush2.xpose.msra.mxu0 0.0
        %557 = vmatprep.subr.mxu0 0.0
        %558 = vmatpush2.xpose.msra.mxu0 0.0
        %559 = vmatprep.subr.mxu0 0.0
        %560 = vmatpush2.xpose.msra.mxu0 0.0
        %561 = vmatprep.subr.mxu0 0.0
        %562 = vmatpush2.xpose.msra.mxu0 0.0
        %563 = vmatprep.subr.mxu0 0.0
        %564 = vmatpush2.xpose.msra.mxu0 0.0
        %565 = vmatprep.subr.mxu0 0.0
        %566 = vmatpush2.xpose.msra.mxu0 0.0
        %567 = vmatprep.subr.mxu0 0.0
        %568 = vmatpush2.xpose.msra.mxu0 0.0
        %569 = vmatprep.subr.mxu0 0.0
        %570 = vmatpush2.xpose.msra.mxu0 0.0
        %571 = vmatprep.subr.mxu0 0.0
        %572 = vmatpush2.xpose.msra.mxu0 0.0
        %573 = vmatprep.mubr.f32.mxu0 0.0
        %574 = vmatmul.mubr.f32.gmra.mxu0 %v504
        %v575 = vpop.f32.mrf.mxu0
        %v576 = vadd.f32 0.0, %v575
        %v577 = vpop.f32.mrf.mxu0
        %578 = vdwg.mxu0
        %vm579 = vcmask 64512
        %v580 = vsel %vm579, %v576, -inf
        %581 = vmax.xlane.f32.xlu0 %v580
        %v582 = vpop.xlane.xlu0 %581
        %v583 = vmax.f32 %v582, -1e+30
        %v584 = vsub.f32 -1e+30, %v583
        %v585 = vmul.f32 %v584, 1.442695
        %v586 = vpow.pop %v585
        %v587 = vsub.f32 %v576, %v583
        %v588 = vmul.f32 %v587, 1.442695
        %v589 = vpow.pop %v588
        %v590 = vmul.f32 %v586, 0.0
        %v591 = vsel %vm579, %v589, 0.0
        %592 = vadd.xlane.f32.xlu0 %v591
        %v593 = vpop.xlane.xlu0 %592
        %v594 = vadd.f32 %v590, %v593
        %v595 = vld [vmem:[#allocation2] sm:$0xff]
        %v596 = vpack.c.bf16 %v589, %v589
        %v597 = vpack.c.bf16 %v595, %v595
        %v599 = vsel %vm579, %v596, 0
        %v602 = vsel %vm353, %v597, 0
        %604 = vmatprep.subr.bf16.mxu0 0
        %605 = vmatpush1.bf16.msra.mxu0 0
        %606 = vmatprep.subr.bf16.mxu0 0
        %607 = vmatpush1.bf16.msra.mxu0 0
        %608 = vmatprep.subr.bf16.mxu0 0
        %609 = vmatpush1.bf16.msra.mxu0 0
        %610 = vmatprep.subr.bf16.mxu0 0
        %611 = vmatpush1.bf16.msra.mxu0 0
        %612 = vmatprep.subr.bf16.mxu0 0
        %613 = vmatpush1.bf16.msra.mxu0 0
        %614 = vmatprep.subr.bf16.mxu0 0
        %615 = vmatpush1.bf16.msra.mxu0 0
        %616 = vmatprep.subr.bf16.mxu0 0
        %617 = vmatpush1.bf16.msra.mxu0 0
        %618 = vmatprep.subr.bf16.mxu0 0
        %619 = vmatpush1.bf16.msra.mxu0 %v602
        %620 = vmatprep.subr.bf16.mxu0 0
        %621 = vmatpush2.bf16.msra.mxu0 0
        %622 = vmatprep.subr.bf16.mxu0 0
        %623 = vmatpush2.bf16.msra.mxu0 0
        %624 = vmatprep.subr.bf16.mxu0 0
        %625 = vmatpush2.bf16.msra.mxu0 0
        %626 = vmatprep.subr.bf16.mxu0 0
        %627 = vmatpush2.bf16.msra.mxu0 0
        %628 = vmatprep.subr.bf16.mxu0 0
        %629 = vmatpush2.bf16.msra.mxu0 0
        %630 = vmatprep.subr.bf16.mxu0 0
        %631 = vmatpush2.bf16.msra.mxu0 0
        %632 = vmatprep.subr.bf16.mxu0 0
        %633 = vmatpush2.bf16.msra.mxu0 0
        %634 = vmatprep.subr.bf16.mxu0 0
        %635 = vmatpush2.bf16.msra.mxu0 0
        %636 = vmatprep.mubr.bf16.mxu0 0
        %637 = vmatmul.mubr.bf16.gmra.mxu0 %v599
        %v638 = vpop.f32.mrf.mxu0
        %v639 = vadd.f32 0.0, %v638
        %v640 = vpop.f32.mrf.mxu0
        %v641 = vpop.f32.mrf.mxu0
        %v642 = vpop.f32.mrf.mxu0
        %643 = vdwg.mxu0
        %v644 = vadd.f32 %v590, %v639
        %v646 = vsel %vm349, %v499, 0
        %648 = vmatprep.subr.mxu0 0.0
        %649 = vmatpush1.xpose.msra.mxu0 0.0
        %650 = vmatprep.subr.mxu0 0.0
        %651 = vmatpush1.xpose.msra.mxu0 0.0
        %652 = vmatprep.subr.mxu0 0.0
        %653 = vmatpush1.xpose.msra.mxu0 0.0
        %654 = vmatprep.subr.mxu0 0.0
        %655 = vmatpush1.xpose.msra.mxu0 0.0
        %656 = vmatprep.subr.mxu0 0.0
        %657 = vmatpush1.xpose.msra.mxu0 0.0
        %658 = vmatprep.subr.mxu0 0.0
        %659 = vmatpush1.xpose.msra.mxu0 0.0
        %660 = vmatprep.subr.mxu0 0.0
        %661 = vmatpush1.xpose.msra.mxu0 0.0
        %662 = vmatprep.subr.mxu0 0.0
        %663 = vmatpush1.xpose.msra.mxu0 0.0
        %664 = vmatprep.subr.mxu0 0.0
        %665 = vmatpush1.xpose.msra.mxu0 0.0
        %666 = vmatprep.subr.mxu0 0.0
        %667 = vmatpush1.xpose.msra.mxu0 0.0
        %668 = vmatprep.subr.mxu0 0.0
        %669 = vmatpush1.xpose.msra.mxu0 0.0
        %670 = vmatprep.subr.mxu0 0.0
        %671 = vmatpush1.xpose.msra.mxu0 0.0
        %672 = vmatprep.subr.mxu0 0.0
        %673 = vmatpush1.xpose.msra.mxu0 0.0
        %674 = vmatprep.subr.mxu0 0.0
        %675 = vmatpush1.xpose.msra.mxu0 0.0
        %676 = vmatprep.subr.mxu0 0.0
        %677 = vmatpush1.xpose.msra.mxu0 0.0
        %678 = vmatprep.subr.mxu0 0.0
        %679 = vmatpush1.xpose.msra.mxu0 %v507
        %680 = vmatprep.subr.mxu0 0.0
        %681 = vmatpush2.xpose.msra.mxu0 0.0
        %682 = vmatprep.subr.mxu0 0.0
        %683 = vmatpush2.xpose.msra.mxu0 0.0
        %684 = vmatprep.subr.mxu0 0.0
        %685 = vmatpush2.xpose.msra.mxu0 0.0
        %686 = vmatprep.subr.mxu0 0.0
        %687 = vmatpush2.xpose.msra.mxu0 0.0
        %688 = vmatprep.subr.mxu0 0.0
        %689 = vmatpush2.xpose.msra.mxu0 0.0
        %690 = vmatprep.subr.mxu0 0.0
        %691 = vmatpush2.xpose.msra.mxu0 0.0
        %692 = vmatprep.subr.mxu0 0.0
        %693 = vmatpush2.xpose.msra.mxu0 0.0
        %694 = vmatprep.subr.mxu0 0.0
        %695 = vmatpush2.xpose.msra.mxu0 0.0
        %696 = vmatprep.subr.mxu0 0.0
        %697 = vmatpush2.xpose.msra.mxu0 0.0
        %698 = vmatprep.subr.mxu0 0.0
        %699 = vmatpush2.xpose.msra.mxu0 0.0
        %700 = vmatprep.subr.mxu0 0.0
        %701 = vmatpush2.xpose.msra.mxu0 0.0
        %702 = vmatprep.subr.mxu0 0.0
        %703 = vmatpush2.xpose.msra.mxu0 0.0
        %704 = vmatprep.subr.mxu0 0.0
        %705 = vmatpush2.xpose.msra.mxu0 0.0
        %706 = vmatprep.subr.mxu0 0.0
        %707 = vmatpush2.xpose.msra.mxu0 0.0
        %708 = vmatprep.subr.mxu0 0.0
        %709 = vmatpush2.xpose.msra.mxu0 0.0
        %710 = vmatprep.subr.mxu0 0.0
        %711 = vmatpush2.xpose.msra.mxu0 0.0
        %712 = vmatprep.mubr.f32.mxu0 0.0
        %713 = vmatmul.mubr.f32.gmra.mxu0 %v646
        %v714 = vpop.f32.mrf.mxu0
        %v715 = vadd.f32 0.0, %v714
        %v716 = vpop.f32.mrf.mxu0
        %717 = vdwg.mxu0
        %v718 = vsel %vm579, %v715, -inf
        %719 = vmax.xlane.f32.xlu0 %v718
        %v720 = vpop.xlane.xlu0 %719
        %v721 = vmax.f32 %v720, -1e+30
        %v722 = vsub.f32 -1e+30, %v721
        %v723 = vmul.f32 %v722, 1.442695
        %v724 = vpow.pop %v723
        %v725 = vsub.f32 %v715, %v721
        %v726 = vmul.f32 %v725, 1.442695
        %v727 = vpow.pop %v726
        %v728 = vmul.f32 %v724, 0.0
        %v729 = vsel %vm579, %v727, 0.0
        %730 = vadd.xlane.f32.xlu0 %v729
        %v731 = vpop.xlane.xlu0 %730
        %v732 = vadd.f32 %v728, %v731
        %s733 = sadd.s32 0, 8
        %s734 = scalar_lea.vmem [#allocation2], %s733
        %v735 = vld [vmem:[%s734] sm:$0xff]
        %v736 = vpack.c.bf16 %v727, %v727
        %v737 = vpack.c.bf16 %v735, %v735
        %v739 = vsel %vm579, %v736, 0
        %v742 = vsel %vm353, %v737, 0
        %744 = vmatprep.subr.bf16.mxu0 0
        %745 = vmatpush1.bf16.msra.mxu0 0
        %746 = vmatprep.subr.bf16.mxu0 0
        %747 = vmatpush1.bf16.msra.mxu0 0
        %748 = vmatprep.subr.bf16.mxu0 0
        %749 = vmatpush1.bf16.msra.mxu0 0
        %750 = vmatprep.subr.bf16.mxu0 0
        %751 = vmatpush1.bf16.msra.mxu0 0
        %752 = vmatprep.subr.bf16.mxu0 0
        %753 = vmatpush1.bf16.msra.mxu0 0
        %754 = vmatprep.subr.bf16.mxu0 0
        %755 = vmatpush1.bf16.msra.mxu0 0
        %756 = vmatprep.subr.bf16.mxu0 0
        %757 = vmatpush1.bf16.msra.mxu0 0
        %758 = vmatprep.subr.bf16.mxu0 0
        %759 = vmatpush1.bf16.msra.mxu0 %v742
        %760 = vmatprep.subr.bf16.mxu0 0
        %761 = vmatpush2.bf16.msra.mxu0 0
        %762 = vmatprep.subr.bf16.mxu0 0
        %763 = vmatpush2.bf16.msra.mxu0 0
        %764 = vmatprep.subr.bf16.mxu0 0
        %765 = vmatpush2.bf16.msra.mxu0 0
        %766 = vmatprep.subr.bf16.mxu0 0
        %767 = vmatpush2.bf16.msra.mxu0 0
        %768 = vmatprep.subr.bf16.mxu0 0
        %769 = vmatpush2.bf16.msra.mxu0 0
        %770 = vmatprep.subr.bf16.mxu0 0
        %771 = vmatpush2.bf16.msra.mxu0 0
        %772 = vmatprep.subr.bf16.mxu0 0
        %773 = vmatpush2.bf16.msra.mxu0 0
        %774 = vmatprep.subr.bf16.mxu0 0
        %775 = vmatpush2.bf16.msra.mxu0 0
        %776 = vmatprep.mubr.bf16.mxu0 0
        %777 = vmatmul.mubr.bf16.gmra.mxu0 %v739
        %v778 = vpop.f32.mrf.mxu0
        %v779 = vadd.f32 0.0, %v778
        %v780 = vpop.f32.mrf.mxu0
        %v781 = vpop.f32.mrf.mxu0
        %v782 = vpop.f32.mrf.mxu0
        %783 = vdwg.mxu0
        %v784 = vadd.f32 %v728, %v779
        %v785 = vrcp.pop %v594
        %v786 = vmul.f32 %v644, %v785
        %v787 = vrcp.pop %v732
        %v788 = vmul.f32 %v784, %v787
        %v789 = vadd.f32 %v786, %v788
        %790 = vst.msk [vmem:[%s175] sm:$0xff] %vm579, %v789
        %s791 = sand.u32 %s107, 1
        %s792 = scalar_lea.sflag [#allocation4], %s791
        %s793 = sand.u32 %s107, 1
        %s794 = smul.addr %s793, 8
        %s795 = scalar_lea.vmem [#allocation3], %s794
        // Predicated region
        $region37: #{tpu_custom_call.1} parent=31 // pred_check
          %p796 = pneg %p117
        $region38: #{tpu_custom_call.1} parent=31 // pred_check_branch
          %798 = sbr.rel (%p796) target = $region40
        $region39: #{tpu_custom_call.1} parent=31 // pred_region
          %s800 = ssub.s32 128, 128
          %801 = vsyncadd %s792, %s800
          %s802 = sadd.s32 %s22, %s21
          %s803 = smul.addr %s802, 128
          %s804 = scalar_lea.hbm %s3, %s803
          %s806 = sshll.u32 %s795, 4
          %s807 = int_to_ptr.vmem [resolvable:$true] %s806
          %809 = dma.vmem_to_hbm [thread:$0]  %s807, 128, %s804, %s792
        $region40: #{tpu_custom_call.1} parent=31 // pred_fallthru
          _
      $region32: #{tpu_custom_call.1} parent=5 // pred_fallthru
        _
      %p810 = scmp.le.s32.totalorder 2, %s12
      // Predicated region
      $region41: #{tpu_custom_call.1} parent=5 // pred_check
        %p811 = pneg %p810
      $region42: #{tpu_custom_call.1} parent=5 // pred_check_branch
        %813 = sbr.rel (%p811) target = $region44
      $region43: #{tpu_custom_call.1} parent=5 // pred_region
        %s814 = ssub.s32 %s12, 2
        // Predicated region
        $region45: #{tpu_custom_call.1} parent=43 // pred_check
          %p815 = pneg %p123
        $region46: #{tpu_custom_call.1} parent=43 // pred_check_branch
          %817 = sbr.rel (%p815) target = $region48
        $region47: #{tpu_custom_call.1} parent=43 // pred_region
          %s818 = sand.u32 %s108, 1
          %s819 = scalar_lea.sflag [#allocation4], %s818
          %s820 = sand.u32 %s108, 1
          %s821 = smul.addr %s820, 8
          %s822 = scalar_lea.vmem [#allocation3], %s821
          %823 = dma.done %s819, 128
        $region48: #{tpu_custom_call.1} parent=43 // pred_fallthru
          _
      $region44: #{tpu_custom_call.1} parent=5 // pred_fallthru
        _
    $region6: #{tpu_custom_call.1} parent=1 // loop_footer
      %s16 = sadd.s32 1, %s12
    $region7: #{tpu_custom_call.1} parent=1 // loop_footer_branch
      %11 = sbr.rel target = $region3
    $region8: #{tpu_custom_call.1} parent=1 // loop_exit
      _
    %824 = vsyncpa [#allocation4], 1
    %s825 = scalar_lea.sflag [#allocation4], 1
    %826 = vsyncpa %s825, 1

</llo_original>
